<compile_context>
chip_gen: v6e
topology: v6e:2x2x1
jax: 0.10.0
libtpu: 0.0.40
codegen_flags: <defaults>
</compile_context>

<pallas_src>
import functools

import jax
import jax.numpy as jnp
from jax.experimental import pallas as pl
from jax.experimental.pallas import tpu as pltpu


def _routing_kernel(rw_ref, x_ref, w_ref, b_ref, o_ref, *, num_experts,
                    compute_dtype):
    """rw_ref: SMEM (E,) f32 softmax routing weights (scalar prefetch).
    x_ref: VMEM (B, F_in); w_ref: VMEM (E, F_out, F_in) (PyTorch layout);
    b_ref: VMEM (E, F_out); o_ref: VMEM (B, F_out)."""
    # Softmax-weighted combination of the expert parameters (VPU, f32).
    # E is tiny and static -> fully unrolled at trace time.
    w_comb = rw_ref[0] * w_ref[0]                       # (F_out, F_in) f32
    b_comb = rw_ref[0] * b_ref[pl.ds(0, 1), :]          # (1, F_out)   f32
    for e in range(1, num_experts):
        w_comb = w_comb + rw_ref[e] * w_ref[e]
        b_comb = b_comb + rw_ref[e] * b_ref[pl.ds(e, 1), :]

    # Single MXU matmul; contract x's F_in with W's F_in (i.e. y = x @ W.T for
    # the PyTorch (out, in) weight layout).  Inputs optionally cast to bf16,
    # accumulation stays f32.
    y = jax.lax.dot_general(
        x_ref[...].astype(compute_dtype),
        w_comb.astype(compute_dtype),
        dimension_numbers=(((1,), (1,)), ((), ())),
        preferred_element_type=jnp.float32)

    o_ref[...] = (y + b_comb).astype(o_ref.dtype)


def adaptive_routing_forward(x, expert_w, expert_b, routing_weights, task_id,
                             *, compute_dtype=jnp.float32):
    """x: (B, F); expert_w: (E, F, F) PyTorch (out, in) layout; expert_b: (E, F);
    routing_weights: (T, E); task_id: int.  Returns (B, F) f32."""
    B, F = x.shape
    E = expert_w.shape[0]

    # Softmax over the E routing logits: E scalars, computed once in the
    # wrapper and handed to the kernel's SMEM via scalar prefetch.
    rw = jax.nn.softmax(routing_weights[task_id].astype(jnp.float32), axis=0)

    kernel = functools.partial(_routing_kernel, num_experts=E,
                               compute_dtype=compute_dtype)

    return pl.pallas_call(
        kernel,
        out_shape=jax.ShapeDtypeStruct((B, F), jnp.float32),
        grid_spec=pltpu.PrefetchScalarGridSpec(
            num_scalar_prefetch=1,          # rw -> SMEM
            grid=(1,),                      # single invocation: everything fits VMEM
            in_specs=[
                pl.BlockSpec((B, F), lambda i, rw: (0, 0)),        # x (full)
                pl.BlockSpec((E, F, F), lambda i, rw: (0, 0, 0)),  # all expert W
                pl.BlockSpec((E, F), lambda i, rw: (0, 0)),        # all expert b
            ],
            out_specs=pl.BlockSpec((B, F), lambda i, rw: (0, 0)),
        ),
        compiler_params=pltpu.CompilerParams(
            dimension_semantics=("arbitrary",)),
    )(rw, x, expert_w, expert_b)


def _reference(x, expert_w, expert_b, routing_weights, task_id):
    # Plain-JAX mirror of the PyTorch forward.
    expert_outputs = jnp.stack(
        [x @ expert_w[e].T + expert_b[e] for e in range(expert_w.shape[0])])
    w = jax.nn.softmax(routing_weights[task_id], axis=0)
    return jnp.sum(expert_outputs * w[:, None, None], axis=0)


if __name__ == "__main__":
    # Small deterministic config: batch=8, in_features=32, num_experts=4, num_tasks=3
    B, F, E, T = 8, 32, 4, 3
    key = jax.random.PRNGKey(0)
    k_x, k_w, k_b, k_r = jax.random.split(key, 4)

    x = jax.random.normal(k_x, (B, F), dtype=jnp.float32)
    # nn.Linear(in_features, in_features) weight shape: (out, in) = (F, F)
    expert_w = jax.random.normal(k_w, (E, F, F), dtype=jnp.float32) * 0.1
    expert_b = jax.random.normal(k_b, (E, F), dtype=jnp.float32) * 0.1
    routing_weights = jax.random.normal(k_r, (T, E), dtype=jnp.float32)
    task_id = 1

    ref = _reference(x, expert_w, expert_b, routing_weights, task_id)

    # f32 MXU path (exact vs. reference at toy scale).
    out_f32 = adaptive_routing_forward(x, expert_w, expert_b, routing_weights,
                                       task_id, compute_dtype=jnp.float32)
    out_f32 = jax.block_until_ready(out_f32)
    assert out_f32.shape == (B, F)
    assert jnp.allclose(out_f32, ref, atol=1e-4, rtol=1e-4)

    # bf16 MXU path (v6e/v7x throughput; f32 accumulate) — looser tolerance.
    out_bf16 = adaptive_routing_forward(x, expert_w, expert_b, routing_weights,
                                        task_id, compute_dtype=jnp.bfloat16)
    out_bf16 = jax.block_until_ready(out_bf16)
    assert jnp.allclose(out_bf16, ref, atol=3e-2, rtol=3e-2)

    print("KERNEL_OK")
</pallas_src>

<mosaic_0001>
module attributes {stable_mosaic.version = 11 : i64} {
  func.func @_routing_kernel(%arg0: i32, %arg1: memref<4xf32, #tpu.memory_space<smem>>, %arg2: memref<8x32xf32, #tpu.memory_space<vmem>>, %arg3: memref<4x32x32xf32, #tpu.memory_space<vmem>>, %arg4: memref<4x32xf32, #tpu.memory_space<vmem>>, %arg5: memref<8x32xf32, #tpu.memory_space<vmem>>) attributes {dimension_semantics = [#tpu.dimension_semantics<arbitrary>], iteration_bounds = array<i64: 1>, scalar_prefetch = 1 : i64, scratch_operands = 0 : i64, tpu.core_type = #tpu.core_type<tc>, window_params = [{pipeline_mode = #tpu.pipeline_mode<synchronous>, transform_indices = @transform_0, window_bounds = array<i64: 8, 32>}, {pipeline_mode = #tpu.pipeline_mode<synchronous>, transform_indices = @transform_1, window_bounds = array<i64: 4, 32, 32>}, {pipeline_mode = #tpu.pipeline_mode<synchronous>, transform_indices = @transform_2, window_bounds = array<i64: 4, 32>}, {pipeline_mode = #tpu.pipeline_mode<synchronous>, transform_indices = @transform_3, window_bounds = array<i64: 8, 32>}]} {
    %c0 = arith.constant 0 : index
    %0 = memref.load %arg1[%c0] : memref<4xf32, #tpu.memory_space<smem>>
    %c0_0 = arith.constant 0 : index
    %c0_1 = arith.constant 0 : index
    %c0_2 = arith.constant 0 : index
    %1 = vector.load %arg3[%c0_0, %c0_1, %c0_2] : memref<4x32x32xf32, #tpu.memory_space<vmem>>, vector<1x32x32xf32>
    %2 = vector.shape_cast %1 : vector<1x32x32xf32> to vector<32x32xf32>
    %3 = vector.broadcast %0 : f32 to vector<32x32xf32>
    %4 = arith.mulf %3, %2 : vector<32x32xf32>
    %c0_3 = arith.constant 0 : index
    %5 = memref.load %arg1[%c0_3] : memref<4xf32, #tpu.memory_space<smem>>
    %c0_4 = arith.constant 0 : index
    %c0_5 = arith.constant 0 : index
    %6 = vector.load %arg4[%c0_4, %c0_5] : memref<4x32xf32, #tpu.memory_space<vmem>>, vector<1x32xf32>
    %7 = vector.broadcast %5 : f32 to vector<1x32xf32>
    %8 = arith.mulf %7, %6 : vector<1x32xf32>
    %c1 = arith.constant 1 : index
    %9 = memref.load %arg1[%c1] : memref<4xf32, #tpu.memory_space<smem>>
    %c1_6 = arith.constant 1 : index
    %c0_7 = arith.constant 0 : index
    %c0_8 = arith.constant 0 : index
    %10 = vector.load %arg3[%c1_6, %c0_7, %c0_8] : memref<4x32x32xf32, #tpu.memory_space<vmem>>, vector<1x32x32xf32>
    %11 = vector.shape_cast %10 : vector<1x32x32xf32> to vector<32x32xf32>
    %12 = vector.broadcast %9 : f32 to vector<32x32xf32>
    %13 = arith.mulf %12, %11 : vector<32x32xf32>
    %14 = arith.addf %4, %13 : vector<32x32xf32>
    %c1_9 = arith.constant 1 : index
    %15 = memref.load %arg1[%c1_9] : memref<4xf32, #tpu.memory_space<smem>>
    %c1_10 = arith.constant 1 : index
    %c0_11 = arith.constant 0 : index
    %16 = vector.load %arg4[%c1_10, %c0_11] : memref<4x32xf32, #tpu.memory_space<vmem>>, vector<1x32xf32>
    %17 = vector.broadcast %15 : f32 to vector<1x32xf32>
    %18 = arith.mulf %17, %16 : vector<1x32xf32>
    %19 = arith.addf %8, %18 : vector<1x32xf32>
    %c2 = arith.constant 2 : index
    %20 = memref.load %arg1[%c2] : memref<4xf32, #tpu.memory_space<smem>>
    %c2_12 = arith.constant 2 : index
    %c0_13 = arith.constant 0 : index
    %c0_14 = arith.constant 0 : index
    %21 = vector.load %arg3[%c2_12, %c0_13, %c0_14] : memref<4x32x32xf32, #tpu.memory_space<vmem>>, vector<1x32x32xf32>
    %22 = vector.shape_cast %21 : vector<1x32x32xf32> to vector<32x32xf32>
    %23 = vector.broadcast %20 : f32 to vector<32x32xf32>
    %24 = arith.mulf %23, %22 : vector<32x32xf32>
    %25 = arith.addf %14, %24 : vector<32x32xf32>
    %c2_15 = arith.constant 2 : index
    %26 = memref.load %arg1[%c2_15] : memref<4xf32, #tpu.memory_space<smem>>
    %c2_16 = arith.constant 2 : index
    %c0_17 = arith.constant 0 : index
    %27 = vector.load %arg4[%c2_16, %c0_17] : memref<4x32xf32, #tpu.memory_space<vmem>>, vector<1x32xf32>
    %28 = vector.broadcast %26 : f32 to vector<1x32xf32>
    %29 = arith.mulf %28, %27 : vector<1x32xf32>
    %30 = arith.addf %19, %29 : vector<1x32xf32>
    %c3 = arith.constant 3 : index
    %31 = memref.load %arg1[%c3] : memref<4xf32, #tpu.memory_space<smem>>
    %c3_18 = arith.constant 3 : index
    %c0_19 = arith.constant 0 : index
    %c0_20 = arith.constant 0 : index
    %32 = vector.load %arg3[%c3_18, %c0_19, %c0_20] : memref<4x32x32xf32, #tpu.memory_space<vmem>>, vector<1x32x32xf32>
    %33 = vector.shape_cast %32 : vector<1x32x32xf32> to vector<32x32xf32>
    %34 = vector.broadcast %31 : f32 to vector<32x32xf32>
    %35 = arith.mulf %34, %33 : vector<32x32xf32>
    %36 = arith.addf %25, %35 : vector<32x32xf32>
    %c3_21 = arith.constant 3 : index
    %37 = memref.load %arg1[%c3_21] : memref<4xf32, #tpu.memory_space<smem>>
    %c3_22 = arith.constant 3 : index
    %c0_23 = arith.constant 0 : index
    %38 = vector.load %arg4[%c3_22, %c0_23] : memref<4x32xf32, #tpu.memory_space<vmem>>, vector<1x32xf32>
    %39 = vector.broadcast %37 : f32 to vector<1x32xf32>
    %40 = arith.mulf %39, %38 : vector<1x32xf32>
    %41 = arith.addf %30, %40 : vector<1x32xf32>
    %c0_24 = arith.constant 0 : index
    %c0_25 = arith.constant 0 : index
    %42 = vector.load %arg2[%c0_24, %c0_25] : memref<8x32xf32, #tpu.memory_space<vmem>>, vector<8x32xf32>
    %cst = arith.constant dense<0.000000e+00> : vector<8x32xf32>
    %43 = tpu.matmul %42, %36, %cst {dimension_numbers = #tpu.dot_dimension_numbers<[1], [1], [0], [0], [0, 0, 1, 0], [], []>} : vector<8x32xf32>, vector<32x32xf32>, vector<8x32xf32> -> vector<8x32xf32>
    %44 = vector.broadcast %41 : vector<1x32xf32> to vector<8x32xf32>
    %45 = arith.addf %43, %44 : vector<8x32xf32>
    %c0_26 = arith.constant 0 : index
    %c0_27 = arith.constant 0 : index
    %46 = vector.load %arg5[%c0_26, %c0_27] : memref<8x32xf32, #tpu.memory_space<vmem>>, vector<8x32xf32>
    tpu.vector_store %arg5[%c0_26, %c0_27], %45 {strides = array<i32>} : memref<8x32xf32, #tpu.memory_space<vmem>>, vector<8x32xf32>,
    return
  }
  func.func @transform_0(%arg0: i32, %arg1: memref<4xf32, #tpu.memory_space<smem>>) -> (i32, i32) {
    %c0_i32 = arith.constant 0 : i32
    %c0_i32_0 = arith.constant 0 : i32
    %c0_i32_1 = arith.constant 0 : i32
    return %c0_i32, %c0_i32_0 : i32, i32
  }
  func.func @transform_1(%arg0: i32, %arg1: memref<4xf32, #tpu.memory_space<smem>>) -> (i32, i32, i32) {
    %c0_i32 = arith.constant 0 : i32
    %c0_i32_0 = arith.constant 0 : i32
    %c0_i32_1 = arith.constant 0 : i32
    %c0_i32_2 = arith.constant 0 : i32
    return %c0_i32, %c0_i32_0, %c0_i32_1 : i32, i32, i32
  }
  func.func @transform_2(%arg0: i32, %arg1: memref<4xf32, #tpu.memory_space<smem>>) -> (i32, i32) {
    %c0_i32 = arith.constant 0 : i32
    %c0_i32_0 = arith.constant 0 : i32
    %c0_i32_1 = arith.constant 0 : i32
    return %c0_i32, %c0_i32_0 : i32, i32
  }
  func.func @transform_3(%arg0: i32, %arg1: memref<4xf32, #tpu.memory_space<smem>>) -> (i32, i32) {
    %c0_i32 = arith.constant 0 : i32
    %c0_i32_0 = arith.constant 0 : i32
    %c0_i32_1 = arith.constant 0 : i32
    return %c0_i32, %c0_i32_0 : i32, i32
  }
}

</mosaic_0001>

<llo_original>
// kernel: tpu_custom_call.1
$region0: #{tpu_custom_call.1}
  #allocation0 [shape = 'u32[]', space=smem, size = 0x4, offset = 0x4, fixed_abs, tag = 'smem constant byte address 0x4 - core index']
  #allocation1 [shape = 'u32[144,128]{1,0:T(1,128)}', space=vmem, size = 0x12000, scoped, tag = 'internal scratch']
  #allocation2 [shape = 's32[1]{0}', space=sflag, size = 0x4, scoped, tag = 'scoped memory for tpu_custom_call.1']
  #allocation3 [shape = 'u8[512]{0}', space=smem, size = 0x200, scoped, tag = 'prefetched SMEM operand 0']
  %s0 = inlined_call_operand.hbm [shape: f32[4], index: 0, kind: input, shape index: {}]
  %s1 = inlined_call_operand.hbm [shape: f32[8,32], index: 1, kind: input, shape index: {}]
  %s2 = inlined_call_operand.hbm [shape: f32[4,32,32], index: 2, kind: input, shape index: {}]
  %s3 = inlined_call_operand.vmem [shape: f32[4,32], index: 3, kind: input, shape index: {}]
  %s4 = inlined_call_operand.hbm [shape: f32[8,32], index: 4, kind: output, shape index: {}]
  %s5 = sld [smem:[#allocation0]]
  $region30: #{tpu_custom_call.1} parent=0
    _
  %s7 = ssub.s32 1, %s5
  %s8 = scalar_select 0, %s7, %s5
  %10 = dma.hbm_to_smem %s0, 16, [#allocation3], [#allocation2]
  %11 = dma.done [#allocation2], 16
  %12 = sfence
  $region1: #{tpu_custom_call.1} parent=0
    #allocation4 [shape = 'u8[4096]{0}', space=vmem, size = 0x1000, scoped, tag = 'input window, operand 1, single buffered']
    #allocation5 [shape = 's32[1]{0}', space=sflag, size = 0x4, scoped, tag = 'scoped memory for tpu_custom_call.1']
    #allocation6 [shape = 's32[1]{0}', space=sflag, size = 0x4, scoped, tag = 'scoped memory for tpu_custom_call.1']
    #allocation7 [shape = 'u8[65536]{0}', space=vmem, size = 0x10000, scoped, tag = 'input window, operand 2, single buffered']
    #allocation8 [shape = 's32[1]{0}', space=sflag, size = 0x4, scoped, tag = 'scoped memory for tpu_custom_call.1']
    #allocation9 [shape = 'u8[4096]{0}', space=vmem, size = 0x1000, scoped, tag = 'output window, operand 0, single buffered']
    %13 = vsyncpa [#allocation5], 0
    %14 = vsyncpa [#allocation8], 0
    %15 = vsyncpa [#allocation6], 0
    // Predicated region
    $region2: #{tpu_custom_call.1} parent=1 // pred_check
      _
    $region3: #{tpu_custom_call.1} parent=1 // pred_check_branch
      %17 = sbr.rel (0) target = $region5
    $region4: #{tpu_custom_call.1} parent=1 // pred_region
      %s19 = ssub.s32 128, 128
      %20 = vsyncadd [#allocation5], %s19
      %s22 = sshll.u32 [#allocation4], 4
      %s23 = int_to_ptr.vmem [resolvable:$true] %s22
      %25 = dma.hbm_to_vmem [thread:$0]  %s1, 128, %s23, [#allocation5]
    $region5: #{tpu_custom_call.1} parent=1 // pred_fallthru
      _
    // Predicated region
    $region6: #{tpu_custom_call.1} parent=1 // pred_check
      _
    $region7: #{tpu_custom_call.1} parent=1 // pred_check_branch
      %27 = sbr.rel (0) target = $region9
    $region8: #{tpu_custom_call.1} parent=1 // pred_region
      %s29 = ssub.s32 2048, 2048
      %30 = vsyncadd [#allocation8], %s29
      %s31 = sshll.u32 [#allocation7], 4
      %s32 = int_to_ptr.vmem [resolvable:$true] %s31
      %37 = dma.hbm_to_vmem [thread:$0]  %s2, 2048, %s32, [#allocation8], 128, 128, 8
    $region9: #{tpu_custom_call.1} parent=1 // pred_fallthru
      _
    // Predicated region
    $region10: #{tpu_custom_call.1} parent=1 // pred_check
      _
    $region11: #{tpu_custom_call.1} parent=1 // pred_check_branch
      %39 = sbr.rel (0) target = $region13
    $region12: #{tpu_custom_call.1} parent=1 // pred_region
      _
    $region13: #{tpu_custom_call.1} parent=1 // pred_fallthru
      _
    // Predicated region
    $region14: #{tpu_custom_call.1} parent=1 // pred_check
      _
    $region15: #{tpu_custom_call.1} parent=1 // pred_check_branch
      %41 = sbr.rel (0) target = $region17
    $region16: #{tpu_custom_call.1} parent=1 // pred_region
      %42 = dma.done [#allocation5], 128
    $region17: #{tpu_custom_call.1} parent=1 // pred_fallthru
      _
    // Predicated region
    $region18: #{tpu_custom_call.1} parent=1 // pred_check
      _
    $region19: #{tpu_custom_call.1} parent=1 // pred_check_branch
      %44 = sbr.rel (0) target = $region21
    $region20: #{tpu_custom_call.1} parent=1 // pred_region
      %45 = dma.done [#allocation8], 2048
    $region21: #{tpu_custom_call.1} parent=1 // pred_fallthru
      _
    %s46 = sld [smem:[#allocation3]]
    %v47 = vld [vmem:[#allocation7] sm:$0xff]
    %v48 = vld [vmem:[#allocation7 + $0x8] sm:$0xff]
    %v49 = vld [vmem:[#allocation7 + $0x10] sm:$0xff]
    %v50 = vld [vmem:[#allocation7 + $0x18] sm:$0xff]
    %v51 = vstv %s46
    %v52 = vmul.f32 %v51, %v47
    %v53 = vmul.f32 %v51, %v48
    %v54 = vmul.f32 %v51, %v49
    %v55 = vmul.f32 %v51, %v50
    %v56 = vld [vmem:[%s3] sm:$0x1]
    %v57 = vmul.f32 %v51, %v56
    %s58 = sld [smem:[#allocation3 + $0x1]]
    %s59 = scalar_lea.vmem [#allocation7], 32
    %v60 = vld [vmem:[%s59] sm:$0xff]
    %v61 = vld [vmem:[%s59 + $0x8] sm:$0xff]
    %v62 = vld [vmem:[%s59 + $0x10] sm:$0xff]
    %v63 = vld [vmem:[%s59 + $0x18] sm:$0xff]
    %v64 = vstv %s58
    %v65 = vmul.f32 %v64, %v60
    %v66 = vmul.f32 %v64, %v61
    %v67 = vmul.f32 %v64, %v62
    %v68 = vmul.f32 %v64, %v63
    %v69 = vadd.f32 %v52, %v65
    %v70 = vadd.f32 %v53, %v66
    %v71 = vadd.f32 %v54, %v67
    %v72 = vadd.f32 %v55, %v68
    %v73 = vld [vmem:[%s3 + $0x1] sm:$0x1]
    %v74 = vmul.f32 %v64, %v73
    %v75 = vadd.f32 %v57, %v74
    %s76 = sld [smem:[#allocation3 + $0x2]]
    %s77 = scalar_lea.vmem [#allocation7], 64
    %v78 = vld [vmem:[%s77] sm:$0xff]
    %v79 = vld [vmem:[%s77 + $0x8] sm:$0xff]
    %v80 = vld [vmem:[%s77 + $0x10] sm:$0xff]
    %v81 = vld [vmem:[%s77 + $0x18] sm:$0xff]
    %v82 = vstv %s76
    %v83 = vmul.f32 %v82, %v78
    %v84 = vmul.f32 %v82, %v79
    %v85 = vmul.f32 %v82, %v80
    %v86 = vmul.f32 %v82, %v81
    %v87 = vadd.f32 %v69, %v83
    %v88 = vadd.f32 %v70, %v84
    %v89 = vadd.f32 %v71, %v85
    %v90 = vadd.f32 %v72, %v86
    %v91 = vld [vmem:[%s3 + $0x2] sm:$0x1]
    %v92 = vmul.f32 %v82, %v91
    %v93 = vadd.f32 %v75, %v92
    %s94 = sld [smem:[#allocation3 + $0x3]]
    %s95 = scalar_lea.vmem [#allocation7], 96
    %v96 = vld [vmem:[%s95] sm:$0xff]
    %v97 = vld [vmem:[%s95 + $0x8] sm:$0xff]
    %v98 = vld [vmem:[%s95 + $0x10] sm:$0xff]
    %v99 = vld [vmem:[%s95 + $0x18] sm:$0xff]
    %v100 = vstv %s94
    %v101 = vmul.f32 %v100, %v96
    %v102 = vmul.f32 %v100, %v97
    %v103 = vmul.f32 %v100, %v98
    %v104 = vmul.f32 %v100, %v99
    %v105 = vadd.f32 %v87, %v101
    %v106 = vadd.f32 %v88, %v102
    %v107 = vadd.f32 %v89, %v103
    %v108 = vadd.f32 %v90, %v104
    %v109 = vld [vmem:[%s3 + $0x3] sm:$0x1]
    %v110 = vmul.f32 %v100, %v109
    %v111 = vadd.f32 %v93, %v110
    %v112 = vld [vmem:[#allocation4] sm:$0xff]
    %v113 = vlaneseq
    %v114 = vshrl.u32 %v113, 7
    %v115 = vsub.s32 0, %v114
    %v116 = vrot.slane %v111, %v115
    %vm117 = vcmask 261120
    %v119 = vsel %vm117, %v112, 0
    %v122 = vsel %vm117, %v105, 0
    %v125 = vsel %vm117, %v106, 0
    %v128 = vsel %vm117, %v107, 0
    %v131 = vsel %vm117, %v108, 0
    %133 = vmatprep.subr.mxu0 0.0
    %134 = vmatpush1.xpose.msra.mxu0 0.0
    %135 = vmatprep.subr.mxu0 0.0
    %136 = vmatpush1.xpose.msra.mxu0 0.0
    %137 = vmatprep.subr.mxu0 0.0
    %138 = vmatpush1.xpose.msra.mxu0 0.0
    %139 = vmatprep.subr.mxu0 0.0
    %140 = vmatpush1.xpose.msra.mxu0 0.0
    %141 = vmatprep.subr.mxu0 0.0
    %142 = vmatpush1.xpose.msra.mxu0 0.0
    %143 = vmatprep.subr.mxu0 0.0
    %144 = vmatpush1.xpose.msra.mxu0 0.0
    %145 = vmatprep.subr.mxu0 0.0
    %146 = vmatpush1.xpose.msra.mxu0 0.0
    %147 = vmatprep.subr.mxu0 0.0
    %148 = vmatpush1.xpose.msra.mxu0 0.0
    %149 = vmatprep.subr.mxu0 0.0
    %150 = vmatpush1.xpose.msra.mxu0 0.0
    %151 = vmatprep.subr.mxu0 0.0
    %152 = vmatpush1.xpose.msra.mxu0 0.0
    %153 = vmatprep.subr.mxu0 0.0
    %154 = vmatpush1.xpose.msra.mxu0 0.0
    %155 = vmatprep.subr.mxu0 0.0
    %156 = vmatpush1.xpose.msra.mxu0 0.0
    %157 = vmatprep.subr.mxu0 0.0
    %158 = vmatpush1.xpose.msra.mxu0 %v131
    %159 = vmatprep.subr.mxu0 0.0
    %160 = vmatpush1.xpose.msra.mxu0 %v128
    %161 = vmatprep.subr.mxu0 0.0
    %162 = vmatpush1.xpose.msra.mxu0 %v125
    %163 = vmatprep.subr.mxu0 0.0
    %164 = vmatpush1.xpose.msra.mxu0 %v122
    %165 = vmatprep.subr.mxu0 0.0
    %166 = vmatpush2.xpose.msra.mxu0 0.0
    %167 = vmatprep.subr.mxu0 0.0
    %168 = vmatpush2.xpose.msra.mxu0 0.0
    %169 = vmatprep.subr.mxu0 0.0
    %170 = vmatpush2.xpose.msra.mxu0 0.0
    %171 = vmatprep.subr.mxu0 0.0
    %172 = vmatpush2.xpose.msra.mxu0 0.0
    %173 = vmatprep.subr.mxu0 0.0
    %174 = vmatpush2.xpose.msra.mxu0 0.0
    %175 = vmatprep.subr.mxu0 0.0
    %176 = vmatpush2.xpose.msra.mxu0 0.0
    %177 = vmatprep.subr.mxu0 0.0
    %178 = vmatpush2.xpose.msra.mxu0 0.0
    %179 = vmatprep.subr.mxu0 0.0
    %180 = vmatpush2.xpose.msra.mxu0 0.0
    %181 = vmatprep.subr.mxu0 0.0
    %182 = vmatpush2.xpose.msra.mxu0 0.0
    %183 = vmatprep.subr.mxu0 0.0
    %184 = vmatpush2.xpose.msra.mxu0 0.0
    %185 = vmatprep.subr.mxu0 0.0
    %186 = vmatpush2.xpose.msra.mxu0 0.0
    %187 = vmatprep.subr.mxu0 0.0
    %188 = vmatpush2.xpose.msra.mxu0 0.0
    %189 = vmatprep.subr.mxu0 0.0
    %190 = vmatpush2.xpose.msra.mxu0 0.0
    %191 = vmatprep.subr.mxu0 0.0
    %192 = vmatpush2.xpose.msra.mxu0 0.0
    %193 = vmatprep.subr.mxu0 0.0
    %194 = vmatpush2.xpose.msra.mxu0 0.0
    %195 = vmatprep.subr.mxu0 0.0
    %196 = vmatpush2.xpose.msra.mxu0 0.0
    %197 = vmatprep.mubr.f32.mxu0 0.0
    %198 = vmatmul.mubr.f32.gmra.mxu0 %v119
    %v199 = vpop.f32.mrf.mxu0
    %v200 = vadd.f32 %v116, %v199
    %v201 = vpop.f32.mrf.mxu0
    %202 = vdwg.mxu0
    %203 = vst.msk [vmem:[#allocation9] sm:$0xff] %vm117, %v200
    // Predicated region
    $region22: #{tpu_custom_call.1} parent=1 // pred_check
      _
    $region23: #{tpu_custom_call.1} parent=1 // pred_check_branch
      %205 = sbr.rel (0) target = $region25
    $region24: #{tpu_custom_call.1} parent=1 // pred_region
      %s207 = ssub.s32 128, 128
      %208 = vsyncadd [#allocation6], %s207
      %s210 = sshll.u32 [#allocation9], 4
      %s211 = int_to_ptr.vmem [resolvable:$true] %s210
      %213 = dma.vmem_to_hbm [thread:$0]  %s211, 128, %s4, [#allocation6]
    $region25: #{tpu_custom_call.1} parent=1 // pred_fallthru
      _
    // Predicated region
    $region26: #{tpu_custom_call.1} parent=1 // pred_check
      _
    $region27: #{tpu_custom_call.1} parent=1 // pred_check_branch
      %215 = sbr.rel (0) target = $region29
    $region28: #{tpu_custom_call.1} parent=1 // pred_region
      %216 = dma.done [#allocation6], 128
    $region29: #{tpu_custom_call.1} parent=1 // pred_fallthru
      _
    %217 = vsyncpa [#allocation5], 1
    %218 = vsyncpa [#allocation8], 1
    %219 = vsyncpa [#allocation6], 1

</llo_original>
